<compile_context>
chip_gen: v6e
topology: v6e:2x2x1
jax: 0.10.0
libtpu: 0.0.40
codegen_flags: <defaults>
</compile_context>

<pallas_src>
import jax
import jax.numpy as jnp
from jax.experimental import pallas as pl
from jax.experimental.pallas import tpu as pltpu


# ----------------------------------------------------------------------------
# in-kernel helpers
# ----------------------------------------------------------------------------
def _mish(h):
    # mish(x) = x * tanh(softplus(x)); stable softplus with exp/log only.
    sp = jnp.maximum(h, 0.0) + jnp.log(1.0 + jnp.exp(-jnp.abs(h)))
    return h * jnp.tanh(sp)


def _shifted_cat(h, offsets, valid_cols):
    """Concat time-shifted copies of h along channels: (T, C) -> (T, K*C).

    Shift rides the XLU (pltpu.roll); the out-of-range edge rows are zeroed with a
    precomputed (T, 1) validity column shared by both convolutions (cheap VPU select)."""
    T = h.shape[0]
    cols = []
    for off in offsets:
        if off == 0:
            cols.append(h)
        else:
            rolled = pltpu.roll(h, shift=(-off) % T, axis=0)   # y[t] = h[t + off] (wrapped)
            cols.append(jnp.where(valid_cols[off], rolled, 0.0))
    return jnp.concatenate(cols, axis=-1)


# ----------------------------------------------------------------------------
# fused PhonemePreNet kernel (one grid step per batch element)
# ----------------------------------------------------------------------------
def _phoneme_prenet_kernel(x_ref, mask_ref,
                           w1_ref, b1_ref, w2_ref, b2_ref,
                           wl_ref, bl_ref, out_ref):
    x = x_ref[0].astype(jnp.float32)                 # (T, D)
    T, D = x.shape
    K = w1_ref.shape[0] // D                         # static: conv kernel size
    pad = (K - 1) // 2
    offsets = [k - pad for k in range(K)]

    # (T, 1) row-validity columns, computed once, reused by both convs.
    rows = jax.lax.broadcasted_iota(jnp.int32, (T, 1), 0)
    valid_cols = {off: (rows + off >= 0) & (rows + off < T)
                  for off in offsets if off != 0}

    # Conv1DBlock #1: conv1d ('same' padding) as one (T, K*D) x (K*D, D) dot, then Mish.
    h = jnp.dot(_shifted_cat(x, offsets, valid_cols), w1_ref[...],
                preferred_element_type=jnp.float32) + b1_ref[...]
    h = _mish(h)

    # Conv1DBlock #2
    h = jnp.dot(_shifted_cat(h, offsets, valid_cols), w2_ref[...],
                preferred_element_type=jnp.float32) + b2_ref[...]
    h = _mish(h)

    # FCBlock: Linear(d_model, d_model)   (bias kept as an explicit zero row)
    h = jnp.dot(h, wl_ref[...], preferred_element_type=jnp.float32) + bl_ref[...]

    # masked_fill(mask.unsqueeze(-1), 0) then residual add.
    m = mask_ref[0]                                  # (T, 1), 1.0 == padded
    h = jnp.where(m > 0.5, 0.0, h)
    out_ref[0] = (x + h).astype(out_ref.dtype)


def phoneme_prenet(x, mask, params):
    """x: (B, T, D) float; mask: (B, T) bool (True == padded) or None -> (B, T, D)."""
    B, T, D = x.shape
    if mask is None:
        mask_f = jnp.zeros((B, T, 1), jnp.float32)
    else:
        mask_f = mask.astype(jnp.float32)[..., None]           # (B, T, 1)

    full = lambda a: pl.BlockSpec(a.shape, lambda b: (0,) * a.ndim)
    return pl.pallas_call(
        _phoneme_prenet_kernel,
        out_shape=jax.ShapeDtypeStruct((B, T, D), x.dtype),
        grid=(B,),
        in_specs=[
            pl.BlockSpec((1, T, D), lambda b: (b, 0, 0)),       # x
            pl.BlockSpec((1, T, 1), lambda b: (b, 0, 0)),       # mask
            full(params["w1"]), full(params["b1"]),
            full(params["w2"]), full(params["b2"]),
            full(params["wl"]), full(params["bl"]),
        ],
        out_specs=pl.BlockSpec((1, T, D), lambda b: (b, 0, 0)),
        compiler_params=pltpu.CompilerParams(
            dimension_semantics=("parallel",)),
    )(x, mask_f, params["w1"], params["b1"], params["w2"], params["b2"],
      params["wl"], params["bl"])


# ----------------------------------------------------------------------------
# deterministic parameter init (conv weights kept both flattened for the kernel
# and as (K, Cin, Cout) for the pure-JAX reference check)
# ----------------------------------------------------------------------------
def _uniform(key, shape, scale):
    return jax.random.uniform(key, shape, jnp.float32, -scale, scale)


def init_phoneme_prenet_params(key, d_model, kernel_size):
    k1, k2, k3, k4, k5 = jax.random.split(key, 5)
    s_conv = (1.0 / (d_model * kernel_size)) ** 0.5
    s_fc = (1.0 / d_model) ** 0.5
    w1 = _uniform(k1, (kernel_size, d_model, d_model), s_conv)   # (K, Cin, Cout)
    w2 = _uniform(k2, (kernel_size, d_model, d_model), s_conv)
    wl = _uniform(k3, (d_model, d_model), s_fc)
    return dict(
        w1=w1.reshape(kernel_size * d_model, d_model),
        b1=_uniform(k4, (1, d_model), s_conv),
        w2=w2.reshape(kernel_size * d_model, d_model),
        b2=_uniform(k5, (1, d_model), s_conv),
        wl=wl,
        bl=jnp.zeros((1, d_model), jnp.float32),   # FCBlock LinearNorm default bias=False
        w1_kcc=w1, w2_kcc=w2,                      # reference-only copies
    )


# ----------------------------------------------------------------------------
# pure-JAX reference (for correctness check)
# ----------------------------------------------------------------------------
def phoneme_prenet_reference(x, mask, p):
    def conv_same(h, w_kcc, b):
        K = w_kcc.shape[0]
        pad = (K - 1) // 2
        T = h.shape[1]
        hp = jnp.pad(h, ((0, 0), (pad, pad), (0, 0)))
        out = jnp.zeros_like(h)
        for k in range(K):
            out = out + jnp.einsum("btc,cd->btd", hp[:, k:k + T, :], w_kcc[k],
                                   precision=jax.lax.Precision.HIGHEST)
        return out + b

    def mish(h):
        return h * jnp.tanh(jax.nn.softplus(h))

    h = mish(conv_same(x, p["w1_kcc"], p["b1"]))
    h = mish(conv_same(h, p["w2_kcc"], p["b2"]))
    h = jnp.einsum("btc,cd->btd", h, p["wl"],
                   precision=jax.lax.Precision.HIGHEST) + p["bl"]
    h = jnp.where(mask[..., None], 0.0, h)
    return x + h


# ----------------------------------------------------------------------------
if __name__ == "__main__":
    B, T, D, K = 2, 16, 32, 3           # batch, phoneme seq len, encoder_hidden, prenet kernel

    key = jax.random.PRNGKey(0)
    kp, kx = jax.random.split(key)
    params = init_phoneme_prenet_params(kp, D, K)

    x = jax.random.normal(kx, (B, T, D), jnp.float32)
    src_len = jnp.array([T, T - 4], jnp.int32)
    mask = jnp.arange(T)[None, :] >= src_len[:, None]          # True == padded

    out = phoneme_prenet(x, mask, params)
    jax.block_until_ready(out)
    assert out.shape == (B, T, D)

    ref = phoneme_prenet_reference(x, mask, params)
    max_err = float(jnp.max(jnp.abs(out - ref)))
    assert max_err < 2e-2, f"mismatch vs reference: max_err={max_err}"

    print("KERNEL_OK")
</pallas_src>

<mosaic_0001>
module attributes {stable_mosaic.version = 11 : i64} {
  func.func @_phoneme_prenet_kernel(%arg0: i32, %arg1: memref<1x16x32xf32, #tpu.memory_space<vmem>>, %arg2: memref<1x16x1xf32, #tpu.memory_space<vmem>>, %arg3: memref<96x32xf32, #tpu.memory_space<vmem>>, %arg4: memref<1x32xf32, #tpu.memory_space<vmem>>, %arg5: memref<96x32xf32, #tpu.memory_space<vmem>>, %arg6: memref<1x32xf32, #tpu.memory_space<vmem>>, %arg7: memref<32x32xf32, #tpu.memory_space<vmem>>, %arg8: memref<1x32xf32, #tpu.memory_space<vmem>>, %arg9: memref<1x16x32xf32, #tpu.memory_space<vmem>>) attributes {dimension_semantics = [#tpu.dimension_semantics<parallel>], iteration_bounds = array<i64: 2>, scalar_prefetch = 0 : i64, scratch_operands = 0 : i64, tpu.core_type = #tpu.core_type<tc>, window_params = [{transform_indices = @transform_0, window_bounds = array<i64: 1, 16, 32>}, {transform_indices = @transform_1, window_bounds = array<i64: 1, 16, 1>}, {pipeline_mode = #tpu.pipeline_mode<synchronous>, transform_indices = @transform_2, window_bounds = array<i64: 96, 32>}, {pipeline_mode = #tpu.pipeline_mode<synchronous>, transform_indices = @transform_3, window_bounds = array<i64: 1, 32>}, {pipeline_mode = #tpu.pipeline_mode<synchronous>, transform_indices = @transform_4, window_bounds = array<i64: 96, 32>}, {pipeline_mode = #tpu.pipeline_mode<synchronous>, transform_indices = @transform_5, window_bounds = array<i64: 1, 32>}, {pipeline_mode = #tpu.pipeline_mode<synchronous>, transform_indices = @transform_6, window_bounds = array<i64: 32, 32>}, {pipeline_mode = #tpu.pipeline_mode<synchronous>, transform_indices = @transform_7, window_bounds = array<i64: 1, 32>}, {transform_indices = @transform_8, window_bounds = array<i64: 1, 16, 32>}]} {
    %c0 = arith.constant 0 : index
    %c0_0 = arith.constant 0 : index
    %c0_1 = arith.constant 0 : index
    %0 = vector.load %arg1[%c0, %c0_0, %c0_1] : memref<1x16x32xf32, #tpu.memory_space<vmem>>, vector<1x16x32xf32>
    %1 = vector.shape_cast %0 : vector<1x16x32xf32> to vector<16x32xf32>
    %2 = tpu.iota {dimensions = array<i32: 0>} : vector<16x1xi32>
    %c-1_i32 = arith.constant -1 : i32
    %3 = vector.broadcast %c-1_i32 : i32 to vector<16x1xi32>
    %4 = arith.addi %2, %3 : vector<16x1xi32>
    %c0_i32 = arith.constant 0 : i32
    %5 = vector.broadcast %c0_i32 : i32 to vector<16x1xi32>
    %6 = arith.cmpi sge, %4, %5 : vector<16x1xi32>
    %c-1_i32_2 = arith.constant -1 : i32
    %7 = vector.broadcast %c-1_i32_2 : i32 to vector<16x1xi32>
    %8 = arith.addi %2, %7 : vector<16x1xi32>
    %c16_i32 = arith.constant 16 : i32
    %9 = vector.broadcast %c16_i32 : i32 to vector<16x1xi32>
    %10 = arith.cmpi slt, %8, %9 : vector<16x1xi32>
    %11 = arith.andi %6, %10 : vector<16x1xi1>
    %c1_i32 = arith.constant 1 : i32
    %12 = vector.broadcast %c1_i32 : i32 to vector<16x1xi32>
    %13 = arith.addi %2, %12 : vector<16x1xi32>
    %c0_i32_3 = arith.constant 0 : i32
    %14 = vector.broadcast %c0_i32_3 : i32 to vector<16x1xi32>
    %15 = arith.cmpi sge, %13, %14 : vector<16x1xi32>
    %c1_i32_4 = arith.constant 1 : i32
    %16 = vector.broadcast %c1_i32_4 : i32 to vector<16x1xi32>
    %17 = arith.addi %2, %16 : vector<16x1xi32>
    %c16_i32_5 = arith.constant 16 : i32
    %18 = vector.broadcast %c16_i32_5 : i32 to vector<16x1xi32>
    %19 = arith.cmpi slt, %17, %18 : vector<16x1xi32>
    %20 = arith.andi %15, %19 : vector<16x1xi1>
    %c1_i32_6 = arith.constant 1 : i32
    %21 = tpu.dynamic_rotate %1 by %c1_i32_6 dim 0 : vector<16x32xf32>, i32 -> vector<16x32xf32>
    %cst = arith.constant 0.000000e+00 : f32
    %22 = vector.shape_cast %11 : vector<16x1xi1> to vector<16x1xi1>
    %23 = vector.broadcast %22 : vector<16x1xi1> to vector<16x32xi1>
    %24 = vector.broadcast %cst : f32 to vector<16x32xf32>
    %25 = arith.select %23, %21, %24 : vector<16x32xi1>, vector<16x32xf32>
    %c15_i32 = arith.constant 15 : i32
    %26 = tpu.dynamic_rotate %1 by %c15_i32 dim 0 : vector<16x32xf32>, i32 -> vector<16x32xf32>
    %cst_7 = arith.constant 0.000000e+00 : f32
    %27 = vector.shape_cast %20 : vector<16x1xi1> to vector<16x1xi1>
    %28 = vector.broadcast %27 : vector<16x1xi1> to vector<16x32xi1>
    %29 = vector.broadcast %cst_7 : f32 to vector<16x32xf32>
    %30 = arith.select %28, %26, %29 : vector<16x32xi1>, vector<16x32xf32>
    %31 = tpu.concatenate %25, %1, %30 in 1 : vector<16x32xf32>, vector<16x32xf32>, vector<16x32xf32> -> vector<16x96xf32>
    %c0_8 = arith.constant 0 : index
    %c0_9 = arith.constant 0 : index
    %32 = vector.load %arg3[%c0_8, %c0_9] : memref<96x32xf32, #tpu.memory_space<vmem>>, vector<96x32xf32>
    %cst_10 = arith.constant dense<0.000000e+00> : vector<16x32xf32>
    %33 = tpu.matmul %31, %32, %cst_10 {dimension_numbers = #tpu.dot_dimension_numbers<[1], [0], [0], [1], [0, 0, 1, 1], [], []>} : vector<16x96xf32>, vector<96x32xf32>, vector<16x32xf32> -> vector<16x32xf32>
    %c0_11 = arith.constant 0 : index
    %c0_12 = arith.constant 0 : index
    %34 = vector.load %arg4[%c0_11, %c0_12] : memref<1x32xf32, #tpu.memory_space<vmem>>, vector<1x32xf32>
    %35 = vector.broadcast %34 : vector<1x32xf32> to vector<16x32xf32>
    %36 = arith.addf %33, %35 : vector<16x32xf32>
    %cst_13 = arith.constant 0.000000e+00 : f32
    %37 = vector.broadcast %cst_13 : f32 to vector<16x32xf32>
    %38 = arith.maximumf %36, %37 : vector<16x32xf32>
    %39 = math.absf %36 : vector<16x32xf32>
    %cst_14 = arith.constant 0.000000e+00 : f32
    %40 = vector.broadcast %cst_14 : f32 to vector<16x32xf32>
    %41 = arith.subf %40, %39 : vector<16x32xf32>
    %42 = math.exp %41 : vector<16x32xf32>
    %cst_15 = arith.constant 1.000000e+00 : f32
    %43 = vector.broadcast %cst_15 : f32 to vector<16x32xf32>
    %44 = arith.addf %43, %42 : vector<16x32xf32>
    %45 = math.log %44 : vector<16x32xf32>
    %46 = arith.addf %38, %45 : vector<16x32xf32>
    %47 = math.tanh %46 : vector<16x32xf32>
    %48 = arith.mulf %36, %47 : vector<16x32xf32>
    %c1_i32_16 = arith.constant 1 : i32
    %49 = tpu.dynamic_rotate %48 by %c1_i32_16 dim 0 : vector<16x32xf32>, i32 -> vector<16x32xf32>
    %cst_17 = arith.constant 0.000000e+00 : f32
    %50 = vector.shape_cast %11 : vector<16x1xi1> to vector<16x1xi1>
    %51 = vector.broadcast %50 : vector<16x1xi1> to vector<16x32xi1>
    %52 = vector.broadcast %cst_17 : f32 to vector<16x32xf32>
    %53 = arith.select %51, %49, %52 : vector<16x32xi1>, vector<16x32xf32>
    %c15_i32_18 = arith.constant 15 : i32
    %54 = tpu.dynamic_rotate %48 by %c15_i32_18 dim 0 : vector<16x32xf32>, i32 -> vector<16x32xf32>
    %cst_19 = arith.constant 0.000000e+00 : f32
    %55 = vector.shape_cast %20 : vector<16x1xi1> to vector<16x1xi1>
    %56 = vector.broadcast %55 : vector<16x1xi1> to vector<16x32xi1>
    %57 = vector.broadcast %cst_19 : f32 to vector<16x32xf32>
    %58 = arith.select %56, %54, %57 : vector<16x32xi1>, vector<16x32xf32>
    %59 = tpu.concatenate %53, %48, %58 in 1 : vector<16x32xf32>, vector<16x32xf32>, vector<16x32xf32> -> vector<16x96xf32>
    %c0_20 = arith.constant 0 : index
    %c0_21 = arith.constant 0 : index
    %60 = vector.load %arg5[%c0_20, %c0_21] : memref<96x32xf32, #tpu.memory_space<vmem>>, vector<96x32xf32>
    %cst_22 = arith.constant dense<0.000000e+00> : vector<16x32xf32>
    %61 = tpu.matmul %59, %60, %cst_22 {dimension_numbers = #tpu.dot_dimension_numbers<[1], [0], [0], [1], [0, 0, 1, 1], [], []>} : vector<16x96xf32>, vector<96x32xf32>, vector<16x32xf32> -> vector<16x32xf32>
    %c0_23 = arith.constant 0 : index
    %c0_24 = arith.constant 0 : index
    %62 = vector.load %arg6[%c0_23, %c0_24] : memref<1x32xf32, #tpu.memory_space<vmem>>, vector<1x32xf32>
    %63 = vector.broadcast %62 : vector<1x32xf32> to vector<16x32xf32>
    %64 = arith.addf %61, %63 : vector<16x32xf32>
    %cst_25 = arith.constant 0.000000e+00 : f32
    %65 = vector.broadcast %cst_25 : f32 to vector<16x32xf32>
    %66 = arith.maximumf %64, %65 : vector<16x32xf32>
    %67 = math.absf %64 : vector<16x32xf32>
    %cst_26 = arith.constant 0.000000e+00 : f32
    %68 = vector.broadcast %cst_26 : f32 to vector<16x32xf32>
    %69 = arith.subf %68, %67 : vector<16x32xf32>
    %70 = math.exp %69 : vector<16x32xf32>
    %cst_27 = arith.constant 1.000000e+00 : f32
    %71 = vector.broadcast %cst_27 : f32 to vector<16x32xf32>
    %72 = arith.addf %71, %70 : vector<16x32xf32>
    %73 = math.log %72 : vector<16x32xf32>
    %74 = arith.addf %66, %73 : vector<16x32xf32>
    %75 = math.tanh %74 : vector<16x32xf32>
    %76 = arith.mulf %64, %75 : vector<16x32xf32>
    %c0_28 = arith.constant 0 : index
    %c0_29 = arith.constant 0 : index
    %77 = vector.load %arg7[%c0_28, %c0_29] : memref<32x32xf32, #tpu.memory_space<vmem>>, vector<32x32xf32>
    %cst_30 = arith.constant dense<0.000000e+00> : vector<16x32xf32>
    %78 = tpu.matmul %76, %77, %cst_30 {dimension_numbers = #tpu.dot_dimension_numbers<[1], [0], [0], [1], [0, 0, 1, 1], [], []>} : vector<16x32xf32>, vector<32x32xf32>, vector<16x32xf32> -> vector<16x32xf32>
    %c0_31 = arith.constant 0 : index
    %c0_32 = arith.constant 0 : index
    %79 = vector.load %arg8[%c0_31, %c0_32] : memref<1x32xf32, #tpu.memory_space<vmem>>, vector<1x32xf32>
    %80 = vector.broadcast %79 : vector<1x32xf32> to vector<16x32xf32>
    %81 = arith.addf %78, %80 : vector<16x32xf32>
    %c0_33 = arith.constant 0 : index
    %c0_34 = arith.constant 0 : index
    %c0_35 = arith.constant 0 : index
    %82 = vector.load %arg2[%c0_33, %c0_34, %c0_35] : memref<1x16x1xf32, #tpu.memory_space<vmem>>, vector<1x16x1xf32>
    %83 = vector.shape_cast %82 : vector<1x16x1xf32> to vector<16x1xf32>
    %cst_36 = arith.constant 5.000000e-01 : f32
    %84 = vector.broadcast %cst_36 : f32 to vector<16x1xf32>
    %85 = arith.cmpf ogt, %83, %84 : vector<16x1xf32>
    %cst_37 = arith.constant 0.000000e+00 : f32
    %86 = vector.shape_cast %85 : vector<16x1xi1> to vector<16x1xi1>
    %87 = vector.broadcast %86 : vector<16x1xi1> to vector<16x32xi1>
    %88 = vector.broadcast %cst_37 : f32 to vector<16x32xf32>
    %89 = arith.select %87, %88, %81 : vector<16x32xi1>, vector<16x32xf32>
    %90 = arith.addf %1, %89 : vector<16x32xf32>
    %c0_38 = arith.constant 0 : index
    %c0_39 = arith.constant 0 : index
    %c0_40 = arith.constant 0 : index
    %91 = vector.load %arg9[%c0_38, %c0_39, %c0_40] : memref<1x16x32xf32, #tpu.memory_space<vmem>>, vector<1x16x32xf32>
    %92 = vector.shape_cast %91 : vector<1x16x32xf32> to vector<16x32xf32>
    %93 = vector.shape_cast %90 : vector<16x32xf32> to vector<1x16x32xf32>
    tpu.vector_store %arg9[%c0_38, %c0_39, %c0_40], %93 {strides = array<i32>} : memref<1x16x32xf32, #tpu.memory_space<vmem>>, vector<1x16x32xf32>,
    return
  }
  func.func @transform_0(%arg0: i32) -> (i32, i32, i32) {
    %c0_i32 = arith.constant 0 : i32
    %c0_i32_0 = arith.constant 0 : i32
    %c0_i32_1 = arith.constant 0 : i32
    return %arg0, %c0_i32, %c0_i32_0 : i32, i32, i32
  }
  func.func @transform_1(%arg0: i32) -> (i32, i32, i32) {
    %c0_i32 = arith.constant 0 : i32
    %c0_i32_0 = arith.constant 0 : i32
    %c0_i32_1 = arith.constant 0 : i32
    return %arg0, %c0_i32, %c0_i32_0 : i32, i32, i32
  }
  func.func @transform_2(%arg0: i32) -> (i32, i32) {
    %c0_i32 = arith.constant 0 : i32
    %c0_i32_0 = arith.constant 0 : i32
    %c0_i32_1 = arith.constant 0 : i32
    return %c0_i32, %c0_i32_0 : i32, i32
  }
  func.func @transform_3(%arg0: i32) -> (i32, i32) {
    %c0_i32 = arith.constant 0 : i32
    %c0_i32_0 = arith.constant 0 : i32
    %c0_i32_1 = arith.constant 0 : i32
    return %c0_i32, %c0_i32_0 : i32, i32
  }
  func.func @transform_4(%arg0: i32) -> (i32, i32) {
    %c0_i32 = arith.constant 0 : i32
    %c0_i32_0 = arith.constant 0 : i32
    %c0_i32_1 = arith.constant 0 : i32
    return %c0_i32, %c0_i32_0 : i32, i32
  }
  func.func @transform_5(%arg0: i32) -> (i32, i32) {
    %c0_i32 = arith.constant 0 : i32
    %c0_i32_0 = arith.constant 0 : i32
    %c0_i32_1 = arith.constant 0 : i32
    return %c0_i32, %c0_i32_0 : i32, i32
  }
  func.func @transform_6(%arg0: i32) -> (i32, i32) {
    %c0_i32 = arith.constant 0 : i32
    %c0_i32_0 = arith.constant 0 : i32
    %c0_i32_1 = arith.constant 0 : i32
    return %c0_i32, %c0_i32_0 : i32, i32
  }
  func.func @transform_7(%arg0: i32) -> (i32, i32) {
    %c0_i32 = arith.constant 0 : i32
    %c0_i32_0 = arith.constant 0 : i32
    %c0_i32_1 = arith.constant 0 : i32
    return %c0_i32, %c0_i32_0 : i32, i32
  }
  func.func @transform_8(%arg0: i32) -> (i32, i32, i32) {
    %c0_i32 = arith.constant 0 : i32
    %c0_i32_0 = arith.constant 0 : i32
    %c0_i32_1 = arith.constant 0 : i32
    return %arg0, %c0_i32, %c0_i32_0 : i32, i32, i32
  }
}

</mosaic_0001>

<llo_original>
// kernel: tpu_custom_call.1
$region0: #{tpu_custom_call.1}
  #allocation0 [shape = 'u32[]', space=smem, size = 0x4, offset = 0x4, fixed_abs, tag = 'smem constant byte address 0x4 - core index']
  #allocation1 [shape = 'u32[144,128]{1,0:T(1,128)}', space=vmem, size = 0x12000, scoped, tag = 'internal scratch']
  %s0 = inlined_call_operand.vmem [shape: f32[2,16,32], index: 0, kind: input, shape index: {}]
  %s1 = inlined_call_operand.vmem [shape: f32[2,16,1], index: 1, kind: input, shape index: {}]
  %s2 = inlined_call_operand.vmem [shape: f32[96,32], index: 2, kind: input, shape index: {}]
  %s3 = inlined_call_operand.vmem [shape: f32[1,32], index: 3, kind: input, shape index: {}]
  %s4 = inlined_call_operand.vmem [shape: f32[96,32], index: 4, kind: input, shape index: {}]
  %s5 = inlined_call_operand.vmem [shape: f32[1,32], index: 5, kind: input, shape index: {}]
  %s6 = inlined_call_operand.vmem [shape: f32[32,32], index: 6, kind: input, shape index: {}]
  %s7 = inlined_call_operand.vmem [shape: f32[1,32], index: 7, kind: input, shape index: {}]
  %s8 = inlined_call_operand.hbm [shape: f32[2,16,32], index: 8, kind: output, shape index: {}]
  %s9 = sld [smem:[#allocation0]]
  $region65: #{tpu_custom_call.1} parent=0
    _
  %s11 = ssub.s32 1, %s9
  %s12 = scalar_select 0, %s11, %s9
  $region1: #{tpu_custom_call.1} parent=0
    #allocation2 [shape = 'u8[16384]{0}', space=vmem, size = 0x4000, scoped, tag = 'output window, operand 0']
    #allocation3 [shape = 's32[2]{0}', space=sflag, size = 0x8, scoped, tag = 'scoped memory for tpu_custom_call.1']
    %13 = vsyncpa [#allocation3], 0
    %s14 = scalar_lea.sflag [#allocation3], 1
    %15 = vsyncpa %s14, 0
    loop: start=0, step=1, limit=4
    $region2: #{tpu_custom_call.1} parent=1 // loop_pre_header
      _
    $region3: #{tpu_custom_call.1} parent=1 // loop_header
      %s17 = sphi 0, %s21
      %p18 = scmp.ge.s32.totalorder %s17, 4
      %s27 = sphi 0, %s29
      %s30 = sphi 0, %s27
      %s31 = sphi 0, %s30
      %s47 = sphi 0, %s31
      %s53 = sphi 0, %s55
      %s56 = sphi 0, %s53
      %s57 = sphi 0, %s56
      %s73 = sphi 0, %s57
      %s77 = sphi 0, %s77
      %s79 = sphi 0, %s77
      %s80 = sphi 0, %s79
      %s94 = sphi 0, %s80
      %s98 = sphi 0, %s98
      %s100 = sphi 0, %s98
      %s101 = sphi 0, %s100
      %s115 = sphi 0, %s101
      %s119 = sphi 0, %s119
      %s121 = sphi 0, %s119
      %s122 = sphi 0, %s121
      %s136 = sphi 0, %s122
      %s140 = sphi 0, %s140
      %s142 = sphi 0, %s140
      %s143 = sphi 0, %s142
      %s157 = sphi 0, %s143
      %s161 = sphi 0, %s161
      %s163 = sphi 0, %s161
      %s164 = sphi 0, %s163
      %s178 = sphi 0, %s164
      %s182 = sphi 0, %s182
      %s184 = sphi 0, %s182
      %s185 = sphi 0, %s184
      %s199 = sphi 0, %s185
      %s205 = sphi 0, %s207
      %s208 = sphi 0, %s205
      %s209 = sphi 0, %s208
      %s225 = sphi 0, %s209
    $region4: #{tpu_custom_call.1} parent=1 // loop_header_branch
      %20 = sbr.rel (%p18) target = $region8
    $region5: #{tpu_custom_call.1} parent=1 // loop_body
      %s22 = ssub.s32 %s17, 1
      %s23 = ssub.s32 %s17, 2
      %s24 = sadd.s32 %s17, 1
      %s25 = ssub.s32 %s17, %s24
      %p26 = scmp.eq.s32.totalorder %s25, 0
      %s28 = sadd.s32 %s27, 1
      %s29 = scalar_select %p26, %s27, %s28
      %p32 = pneg %p26
      %p33 = scmp.eq.s32.totalorder %s17, 1
      %p34 = por %p32, %p33
      %p35 = scmp.ne.s32.totalorder %s27, %s30
      %p36 = scmp.eq.s32.totalorder %s17, 0
      %p37 = por %p35, %p36
      %p38 = scmp.ne.s32.totalorder %s27, %s30
      %p39 = scmp.eq.s32.totalorder %s22, 1
      %p40 = por %p38, %p39
      %p41 = scmp.ne.s32.totalorder %s30, %s31
      %p42 = scmp.eq.s32.totalorder %s22, 0
      %p43 = por %p41, %p42
      %p44 = scmp.ne.s32.totalorder %s30, %s31
      %p45 = scmp.eq.s32.totalorder %s23, 1
      %p46 = por %p44, %p45
      %p48 = scmp.ne.s32.totalorder %s31, %s47
      %p49 = scmp.eq.s32.totalorder %s23, 0
      %p50 = por %p48, %p49
      %s51 = ssub.s32 %s17, %s24
      %p52 = scmp.eq.s32.totalorder %s51, 0
      %s54 = sadd.s32 %s53, 1
      %s55 = scalar_select %p52, %s53, %s54
      %p58 = pneg %p52
      %p59 = scmp.eq.s32.totalorder %s17, 1
      %p60 = por %p58, %p59
      %p61 = scmp.ne.s32.totalorder %s53, %s56
      %p62 = scmp.eq.s32.totalorder %s17, 0
      %p63 = por %p61, %p62
      %p64 = scmp.ne.s32.totalorder %s53, %s56
      %p65 = scmp.eq.s32.totalorder %s22, 1
      %p66 = por %p64, %p65
      %p67 = scmp.ne.s32.totalorder %s56, %s57
      %p68 = scmp.eq.s32.totalorder %s22, 0
      %p69 = por %p67, %p68
      %p70 = scmp.ne.s32.totalorder %s56, %s57
      %p71 = scmp.eq.s32.totalorder %s23, 1
      %p72 = por %p70, %p71
      %p74 = scmp.ne.s32.totalorder %s57, %s73
      %p75 = scmp.eq.s32.totalorder %s23, 0
      %p76 = por %p74, %p75
      %s78 = sadd.s32 %s77, 1
      %p81 = scmp.eq.s32.totalorder %s17, 1
      %p82 = scmp.ne.s32.totalorder %s77, %s79
      %p83 = scmp.eq.s32.totalorder %s17, 0
      %p84 = por %p82, %p83
      %p85 = scmp.ne.s32.totalorder %s77, %s79
      %p86 = scmp.eq.s32.totalorder %s22, 1
      %p87 = por %p85, %p86
      %p88 = scmp.ne.s32.totalorder %s79, %s80
      %p89 = scmp.eq.s32.totalorder %s22, 0
      %p90 = por %p88, %p89
      %p91 = scmp.ne.s32.totalorder %s79, %s80
      %p92 = scmp.eq.s32.totalorder %s23, 1
      %p93 = por %p91, %p92
      %p95 = scmp.ne.s32.totalorder %s80, %s94
      %p96 = scmp.eq.s32.totalorder %s23, 0
      %p97 = por %p95, %p96
      %s99 = sadd.s32 %s98, 1
      %p102 = scmp.eq.s32.totalorder %s17, 1
      %p103 = scmp.ne.s32.totalorder %s98, %s100
      %p104 = scmp.eq.s32.totalorder %s17, 0
      %p105 = por %p103, %p104
      %p106 = scmp.ne.s32.totalorder %s98, %s100
      %p107 = scmp.eq.s32.totalorder %s22, 1
      %p108 = por %p106, %p107
      %p109 = scmp.ne.s32.totalorder %s100, %s101
      %p110 = scmp.eq.s32.totalorder %s22, 0
      %p111 = por %p109, %p110
      %p112 = scmp.ne.s32.totalorder %s100, %s101
      %p113 = scmp.eq.s32.totalorder %s23, 1
      %p114 = por %p112, %p113
      %p116 = scmp.ne.s32.totalorder %s101, %s115
      %p117 = scmp.eq.s32.totalorder %s23, 0
      %p118 = por %p116, %p117
      %s120 = sadd.s32 %s119, 1
      %p123 = scmp.eq.s32.totalorder %s17, 1
      %p124 = scmp.ne.s32.totalorder %s119, %s121
      %p125 = scmp.eq.s32.totalorder %s17, 0
      %p126 = por %p124, %p125
      %p127 = scmp.ne.s32.totalorder %s119, %s121
      %p128 = scmp.eq.s32.totalorder %s22, 1
      %p129 = por %p127, %p128
      %p130 = scmp.ne.s32.totalorder %s121, %s122
      %p131 = scmp.eq.s32.totalorder %s22, 0
      %p132 = por %p130, %p131
      %p133 = scmp.ne.s32.totalorder %s121, %s122
      %p134 = scmp.eq.s32.totalorder %s23, 1
      %p135 = por %p133, %p134
      %p137 = scmp.ne.s32.totalorder %s122, %s136
      %p138 = scmp.eq.s32.totalorder %s23, 0
      %p139 = por %p137, %p138
      %s141 = sadd.s32 %s140, 1
      %p144 = scmp.eq.s32.totalorder %s17, 1
      %p145 = scmp.ne.s32.totalorder %s140, %s142
      %p146 = scmp.eq.s32.totalorder %s17, 0
      %p147 = por %p145, %p146
      %p148 = scmp.ne.s32.totalorder %s140, %s142
      %p149 = scmp.eq.s32.totalorder %s22, 1
      %p150 = por %p148, %p149
      %p151 = scmp.ne.s32.totalorder %s142, %s143
      %p152 = scmp.eq.s32.totalorder %s22, 0
      %p153 = por %p151, %p152
      %p154 = scmp.ne.s32.totalorder %s142, %s143
      %p155 = scmp.eq.s32.totalorder %s23, 1
      %p156 = por %p154, %p155
      %p158 = scmp.ne.s32.totalorder %s143, %s157
      %p159 = scmp.eq.s32.totalorder %s23, 0
      %p160 = por %p158, %p159
      %s162 = sadd.s32 %s161, 1
      %p165 = scmp.eq.s32.totalorder %s17, 1
      %p166 = scmp.ne.s32.totalorder %s161, %s163
      %p167 = scmp.eq.s32.totalorder %s17, 0
      %p168 = por %p166, %p167
      %p169 = scmp.ne.s32.totalorder %s161, %s163
      %p170 = scmp.eq.s32.totalorder %s22, 1
      %p171 = por %p169, %p170
      %p172 = scmp.ne.s32.totalorder %s163, %s164
      %p173 = scmp.eq.s32.totalorder %s22, 0
      %p174 = por %p172, %p173
      %p175 = scmp.ne.s32.totalorder %s163, %s164
      %p176 = scmp.eq.s32.totalorder %s23, 1
      %p177 = por %p175, %p176
      %p179 = scmp.ne.s32.totalorder %s164, %s178
      %p180 = scmp.eq.s32.totalorder %s23, 0
      %p181 = por %p179, %p180
      %s183 = sadd.s32 %s182, 1
      %p186 = scmp.eq.s32.totalorder %s17, 1
      %p187 = scmp.ne.s32.totalorder %s182, %s184
      %p188 = scmp.eq.s32.totalorder %s17, 0
      %p189 = por %p187, %p188
      %p190 = scmp.ne.s32.totalorder %s182, %s184
      %p191 = scmp.eq.s32.totalorder %s22, 1
      %p192 = por %p190, %p191
      %p193 = scmp.ne.s32.totalorder %s184, %s185
      %p194 = scmp.eq.s32.totalorder %s22, 0
      %p195 = por %p193, %p194
      %p196 = scmp.ne.s32.totalorder %s184, %s185
      %p197 = scmp.eq.s32.totalorder %s23, 1
      %p198 = por %p196, %p197
      %p200 = scmp.ne.s32.totalorder %s185, %s199
      %p201 = scmp.eq.s32.totalorder %s23, 0
      %p202 = por %p200, %p201
      %s203 = ssub.s32 %s17, %s24
      %p204 = scmp.eq.s32.totalorder %s203, 0
      %s206 = sadd.s32 %s205, 1
      %s207 = scalar_select %p204, %s205, %s206
      %p210 = pneg %p204
      %p211 = scmp.eq.s32.totalorder %s17, 1
      %p212 = por %p210, %p211
      %p213 = scmp.ne.s32.totalorder %s205, %s208
      %p214 = scmp.eq.s32.totalorder %s17, 0
      %p215 = por %p213, %p214
      %p216 = scmp.ne.s32.totalorder %s205, %s208
      %p217 = scmp.eq.s32.totalorder %s22, 1
      %p218 = por %p216, %p217
      %p219 = scmp.ne.s32.totalorder %s208, %s209
      %p220 = scmp.eq.s32.totalorder %s22, 0
      %p221 = por %p219, %p220
      %p222 = scmp.ne.s32.totalorder %s208, %s209
      %p223 = scmp.eq.s32.totalorder %s23, 1
      %p224 = por %p222, %p223
      %p226 = scmp.ne.s32.totalorder %s209, %s225
      %p227 = scmp.eq.s32.totalorder %s23, 0
      %p228 = por %p226, %p227
      %p229 = scmp.le.s32.totalorder 1, %s17
      %p230 = scmp.lt.s32.totalorder %s17, 3
      %p231 = pnand %p229, %p230
      %p232 = pneg %p231
      // Predicated region
      $region9: #{tpu_custom_call.1} parent=5 // pred_check
        _
      $region10: #{tpu_custom_call.1} parent=5 // pred_check_branch
        %234 = sbr.rel (%p231) target = $region12
      $region11: #{tpu_custom_call.1} parent=5 // pred_region
        %s235 = ssub.s32 %s17, 1
        // Predicated region
        $region13: #{tpu_custom_call.1} parent=11 // pred_check
          %p236 = pneg %p90
        $region14: #{tpu_custom_call.1} parent=11 // pred_check_branch
          %238 = sbr.rel (%p236) target = $region16
        $region15: #{tpu_custom_call.1} parent=11 // pred_region
          _
        $region16: #{tpu_custom_call.1} parent=11 // pred_fallthru
          _
        // Predicated region
        $region17: #{tpu_custom_call.1} parent=11 // pred_check
          %p239 = pneg %p111
        $region18: #{tpu_custom_call.1} parent=11 // pred_check_branch
          %241 = sbr.rel (%p239) target = $region20
        $region19: #{tpu_custom_call.1} parent=11 // pred_region
          _
        $region20: #{tpu_custom_call.1} parent=11 // pred_fallthru
          _
        // Predicated region
        $region21: #{tpu_custom_call.1} parent=11 // pred_check
          %p242 = pneg %p132
        $region22: #{tpu_custom_call.1} parent=11 // pred_check_branch
          %244 = sbr.rel (%p242) target = $region24
        $region23: #{tpu_custom_call.1} parent=11 // pred_region
          _
        $region24: #{tpu_custom_call.1} parent=11 // pred_fallthru
          _
        // Predicated region
        $region25: #{tpu_custom_call.1} parent=11 // pred_check
          %p245 = pneg %p153
        $region26: #{tpu_custom_call.1} parent=11 // pred_check_branch
          %247 = sbr.rel (%p245) target = $region28
        $region27: #{tpu_custom_call.1} parent=11 // pred_region
          _
        $region28: #{tpu_custom_call.1} parent=11 // pred_fallthru
          _
        // Predicated region
        $region29: #{tpu_custom_call.1} parent=11 // pred_check
          %p248 = pneg %p174
        $region30: #{tpu_custom_call.1} parent=11 // pred_check_branch
          %250 = sbr.rel (%p248) target = $region32
        $region31: #{tpu_custom_call.1} parent=11 // pred_region
          _
        $region32: #{tpu_custom_call.1} parent=11 // pred_fallthru
          _
        // Predicated region
        $region33: #{tpu_custom_call.1} parent=11 // pred_check
          %p251 = pneg %p195
        $region34: #{tpu_custom_call.1} parent=11 // pred_check_branch
          %253 = sbr.rel (%p251) target = $region36
        $region35: #{tpu_custom_call.1} parent=11 // pred_region
          _
        $region36: #{tpu_custom_call.1} parent=11 // pred_fallthru
          _
      $region12: #{tpu_custom_call.1} parent=5 // pred_fallthru
        _
      %p254 = scmp.lt.s32.totalorder %s17, 2
      // Predicated region
      $region37: #{tpu_custom_call.1} parent=5 // pred_check
        %p255 = pneg %p254
      $region38: #{tpu_custom_call.1} parent=5 // pred_check_branch
        %257 = sbr.rel (%p255) target = $region40
      $region39: #{tpu_custom_call.1} parent=5 // pred_region
        // Predicated region
        $region41: #{tpu_custom_call.1} parent=39 // pred_check
          %p258 = pneg %p37
        $region42: #{tpu_custom_call.1} parent=39 // pred_check_branch
          %260 = sbr.rel (%p258) target = $region44
        $region43: #{tpu_custom_call.1} parent=39 // pred_region
          %p261 = scmp.lt.s32.totalorder %s17, 1
          %s262 = scalar_select %p261, %s17, 1
          %s263 = smul.addr %s262, 2
          %s264 = smul.addr %s263, 8
          %s265 = scalar_lea.vmem %s0, %s264
        $region44: #{tpu_custom_call.1} parent=39 // pred_fallthru
          _
        // Predicated region
        $region45: #{tpu_custom_call.1} parent=39 // pred_check
          %p266 = pneg %p63
        $region46: #{tpu_custom_call.1} parent=39 // pred_check_branch
          %268 = sbr.rel (%p266) target = $region48
        $region47: #{tpu_custom_call.1} parent=39 // pred_region
          %p269 = scmp.lt.s32.totalorder %s17, 1
          %s270 = scalar_select %p269, %s17, 1
          %s271 = smul.addr %s270, 2
          %s272 = smul.addr %s271, 8
          %s273 = scalar_lea.vmem %s1, %s272
        $region48: #{tpu_custom_call.1} parent=39 // pred_fallthru
          _
      $region40: #{tpu_custom_call.1} parent=5 // pred_fallthru
        _
      %p274 = scmp.le.s32.totalorder 1, %s17
      %p275 = scmp.lt.s32.totalorder %s17, 3
      %p276 = pnand %p274, %p275
      %p277 = pneg %p276
      // Predicated region
      $region49: #{tpu_custom_call.1} parent=5 // pred_check
        _
      $region50: #{tpu_custom_call.1} parent=5 // pred_check_branch
        %279 = sbr.rel (%p276) target = $region52
      $region51: #{tpu_custom_call.1} parent=5 // pred_region
        %s280 = ssub.s32 %s17, 1
        %p281 = scmp.lt.s32.totalorder %s22, 1
        %s282 = scalar_select %p281, %s22, 1
        %s283 = smul.addr %s282, 2
        %s284 = smul.addr %s283, 8
        %s285 = scalar_lea.vmem %s0, %s284
        %p286 = pneg %p43
        %p287 = pneg %p40
        %p288 = scmp.lt.s32.totalorder %s22, 1
        %s289 = scalar_select %p288, %s22, 1
        %s290 = smul.addr %s289, 2
        %s291 = smul.addr %s290, 8
        %s292 = scalar_lea.vmem %s1, %s291
        %p293 = pneg %p69
        %p294 = pneg %p66
        %p295 = pneg %p90
        %p296 = pneg %p87
        %p297 = pneg %p111
        %p298 = pneg %p108
        %p299 = pneg %p132
        %p300 = pneg %p129
        %p301 = pneg %p153
        %p302 = pneg %p150
        %p303 = pneg %p174
        %p304 = pneg %p171
        %p305 = pneg %p195
        %p306 = pneg %p192
        %p307 = pneg %p221
        %p308 = pneg %p218
        %s309 = sand.u32 %s208, 1
        %s310 = scalar_lea.sflag [#allocation3], %s309
        %s311 = sand.u32 %s208, 1
        %s312 = smul.addr %s311, 16
        %s313 = scalar_lea.vmem [#allocation2], %s312
        %p314 = scmp.lt.s32.totalorder %s22, 1
        %s315 = scalar_select %p314, %s22, 1
        %s316 = smul.addr %s315, 2
        %s317 = smul.addr %s316, 8
        %s318 = scalar_lea.vmem %s0, %s317
        %p319 = scmp.lt.s32.totalorder %s22, 1
        %s320 = scalar_select %p319, %s22, 1
        %s321 = smul.addr %s320, 2
        %s322 = smul.addr %s321, 8
        %s323 = scalar_lea.vmem %s1, %s322
        %v324 = vld [vmem:[%s318] sm:$0xff]
        %v325 = vld [vmem:[%s318 + $0x8] sm:$0xff]
        %v326 = vlaneseq
        %v327 = vshrl.u32 %v326, 7
        %v328 = vadd.s32 %v327, 8
        %v329 = vadd.s32 %v327, 4294967295
        %v330 = vadd.s32 %v328, 4294967295
        %vm331 = vcmp.ge.s32.totalorder %v329, 0
        %vm332 = vcmp.ge.s32.totalorder %v330, 0
        %vm333 = vcmp.lt.s32.totalorder %v329, 16
        %vm334 = vcmp.lt.s32.totalorder %v330, 16
        %vm335 = vmand %vm331, %vm333
        %vm336 = vmand %vm332, %vm334
        %v337 = vadd.s32 %v327, 1
        %v338 = vadd.s32 %v328, 1
        %vm339 = vcmp.ge.s32.totalorder %v337, 0
        %vm340 = vcmp.ge.s32.totalorder %v338, 0
        %vm341 = vcmp.lt.s32.totalorder %v337, 16
        %vm342 = vcmp.lt.s32.totalorder %v338, 16
        %vm343 = vmand %vm339, %vm341
        %vm344 = vmand %vm340, %vm342
        %v345 = vrot.slane %v324, 7
        %v346 = vrot.slane %v325, 7
        %vm347 = vcmp.lt.s32.totalorder %v327, 1
        %v348 = vsel %vm347, %v345, %v346
        %v349 = vsel %vm347, %v346, %v345
        %v350 = vsel %vm335, 1, 0
        %v351 = vsel %vm336, 1, 0
        %vm352 = vcmp.eq.s32.totalorder %v350, 1
        %vm353 = vcmp.eq.s32.totalorder %v351, 1
        %v354 = vsel %vm352, %v349, 0.0
        %v355 = vsel %vm353, %v348, 0.0
        %v356 = vrot.slane %v324, 1
        %v357 = vrot.slane %v325, 1
        %vm358 = vcmp.lt.s32.totalorder %v327, 7
        %v359 = vsel %vm358, %v356, %v357
        %v360 = vsel %vm358, %v357, %v356
        %v361 = vsel %vm343, 1, 0
        %v362 = vsel %vm344, 1, 0
        %vm363 = vcmp.eq.s32.totalorder %v361, 1
        %vm364 = vcmp.eq.s32.totalorder %v362, 1
        %v365 = vsel %vm363, %v359, 0.0
        %v366 = vsel %vm364, %v360, 0.0
        %369 = vrot.lane.b32.xlu0 %v324, 32
        %v370 = vpop.permute.xlu0 %369
        %371 = vrot.lane.b32.xlu0 %v325, 32
        %v372 = vpop.permute.xlu0 %371
        %377 = vrot.lane.b32.xlu0 %v365, 64
        %v378 = vpop.permute.xlu0 %377
        %379 = vrot.lane.b32.xlu0 %v366, 64
        %v380 = vpop.permute.xlu0 %379
        %vm383 = vcmask 261120
        %v384 = vsel %vm383, %v354, %v370
        %v385 = vsel %vm383, %v355, %v372
        %vm386 = vcmask 523264
        %v387 = vsel %vm386, %v384, %v378
        %v388 = vsel %vm386, %v385, %v380
        %v389 = vld [vmem:[%s2] sm:$0xff]
        %v390 = vld [vmem:[%s2 + $0x8] sm:$0xff]
        %v391 = vld [vmem:[%s2 + $0x10] sm:$0xff]
        %v392 = vld [vmem:[%s2 + $0x18] sm:$0xff]
        %v393 = vld [vmem:[%s2 + $0x20] sm:$0xff]
        %v394 = vld [vmem:[%s2 + $0x28] sm:$0xff]
        %v395 = vld [vmem:[%s2 + $0x30] sm:$0xff]
        %v396 = vld [vmem:[%s2 + $0x38] sm:$0xff]
        %v397 = vld [vmem:[%s2 + $0x40] sm:$0xff]
        %v398 = vld [vmem:[%s2 + $0x48] sm:$0xff]
        %v399 = vld [vmem:[%s2 + $0x50] sm:$0xff]
        %v400 = vld [vmem:[%s2 + $0x58] sm:$0xff]
        %v401 = vld [vmem:[%s3] sm:$0x1]
        %v403 = vlaneseq
        %v404 = vshrl.u32 %v403, 7
        %v405 = vsub.s32 0, %v404
        %v406 = vrot.slane %v401, %v405
        %vm408 = vcmask 785408
        %v410 = vsel %vm408, %v387, 0
        %v413 = vsel %vm408, %v388, 0
        %415 = vmatprep.subr.mxu0 0.0
        %416 = vmatpush1.msra.mxu0 0.0
        %417 = vmatprep.subr.mxu0 0.0
        %418 = vmatpush1.msra.mxu0 0.0
        %419 = vmatprep.subr.mxu0 0.0
        %420 = vmatpush1.msra.mxu0 0.0
        %421 = vmatprep.subr.mxu0 0.0
        %422 = vmatpush1.msra.mxu0 0.0
        %423 = vmatprep.subr.mxu0 0.0
        %424 = vmatpush1.msra.mxu0 %v400
        %425 = vmatprep.subr.mxu0 0.0
        %426 = vmatpush1.msra.mxu0 %v399
        %427 = vmatprep.subr.mxu0 0.0
        %428 = vmatpush1.msra.mxu0 %v398
        %429 = vmatprep.subr.mxu0 0.0
        %430 = vmatpush1.msra.mxu0 %v397
        %431 = vmatprep.subr.mxu0 0.0
        %432 = vmatpush1.msra.mxu0 %v396
        %433 = vmatprep.subr.mxu0 0.0
        %434 = vmatpush1.msra.mxu0 %v395
        %435 = vmatprep.subr.mxu0 0.0
        %436 = vmatpush1.msra.mxu0 %v394
        %437 = vmatprep.subr.mxu0 0.0
        %438 = vmatpush1.msra.mxu0 %v393
        %439 = vmatprep.subr.mxu0 0.0
        %440 = vmatpush1.msra.mxu0 %v392
        %441 = vmatprep.subr.mxu0 0.0
        %442 = vmatpush1.msra.mxu0 %v391
        %443 = vmatprep.subr.mxu0 0.0
        %444 = vmatpush1.msra.mxu0 %v390
        %445 = vmatprep.subr.mxu0 0.0
        %446 = vmatpush1.msra.mxu0 %v389
        %447 = vmatprep.subr.mxu0 0.0
        %448 = vmatpush2.msra.mxu0 0.0
        %449 = vmatprep.subr.mxu0 0.0
        %450 = vmatpush2.msra.mxu0 0.0
        %451 = vmatprep.subr.mxu0 0.0
        %452 = vmatpush2.msra.mxu0 0.0
        %453 = vmatprep.subr.mxu0 0.0
        %454 = vmatpush2.msra.mxu0 0.0
        %455 = vmatprep.subr.mxu0 0.0
        %456 = vmatpush2.msra.mxu0 0.0
        %457 = vmatprep.subr.mxu0 0.0
        %458 = vmatpush2.msra.mxu0 0.0
        %459 = vmatprep.subr.mxu0 0.0
        %460 = vmatpush2.msra.mxu0 0.0
        %461 = vmatprep.subr.mxu0 0.0
        %462 = vmatpush2.msra.mxu0 0.0
        %463 = vmatprep.subr.mxu0 0.0
        %464 = vmatpush2.msra.mxu0 0.0
        %465 = vmatprep.subr.mxu0 0.0
        %466 = vmatpush2.msra.mxu0 0.0
        %467 = vmatprep.subr.mxu0 0.0
        %468 = vmatpush2.msra.mxu0 0.0
        %469 = vmatprep.subr.mxu0 0.0
        %470 = vmatpush2.msra.mxu0 0.0
        %471 = vmatprep.subr.mxu0 0.0
        %472 = vmatpush2.msra.mxu0 0.0
        %473 = vmatprep.subr.mxu0 0.0
        %474 = vmatpush2.msra.mxu0 0.0
        %475 = vmatprep.subr.mxu0 0.0
        %476 = vmatpush2.msra.mxu0 0.0
        %477 = vmatprep.subr.mxu0 0.0
        %478 = vmatpush2.msra.mxu0 0.0
        %479 = vmatprep.mubr.f32.mxu0 0.0
        %480 = vmatmul.mubr.f32.gmra.mxu0 %v410
        %v481 = vpop.f32.mrf.mxu0
        %v482 = vadd.f32 %v406, %v481
        %v483 = vpop.f32.mrf.mxu0
        %484 = vmatprep.mubr.f32.mxu0 0.0
        %485 = vmatmul.mubr.f32.gmra.mxu0 %v413
        %v486 = vpop.f32.mrf.mxu0
        %v487 = vadd.f32 %v406, %v486
        %v488 = vpop.f32.mrf.mxu0
        %489 = vdwg.mxu0
        %v490 = vmax.f32 %v482, 0.0
        %v491 = vmax.f32 %v487, 0.0
        %v492 = vand.u32 2147483647, %v482
        %v493 = vand.u32 2147483647, %v487
        %v494 = vsub.f32 0.0, %v492
        %v495 = vsub.f32 0.0, %v493
        %v496 = vmul.f32 %v494, 1.442695
        %v497 = vpow.pop %v496
        %v498 = vmul.f32 %v495, 1.442695
        %v499 = vpow.pop %v498
        %v500 = vadd.f32 %v497, 1.0
        %v501 = vadd.f32 %v499, 1.0
        %v502 = vlog2.pop %v500
        %v503 = vmul.f32 %v502, 0.6931472
        %v504 = vlog2.pop %v501
        %v505 = vmul.f32 %v504, 0.6931472
        %v506 = vadd.f32 %v490, %v503
        %v507 = vadd.f32 %v491, %v505
        %v508 = vtanh.pop %v506
        %v509 = vtanh.pop %v507
        %v510 = vmul.f32 %v482, %v508
        %v511 = vmul.f32 %v487, %v509
        %v512 = vrot.slane %v510, 7
        %v513 = vrot.slane %v511, 7
        %v514 = vsel %vm347, %v512, %v513
        %v515 = vsel %vm347, %v513, %v512
        %v516 = vsel %vm352, %v515, 0.0
        %v517 = vsel %vm353, %v514, 0.0
        %v518 = vrot.slane %v510, 1
        %v519 = vrot.slane %v511, 1
        %v520 = vsel %vm358, %v518, %v519
        %v521 = vsel %vm358, %v519, %v518
        %v522 = vsel %vm363, %v520, 0.0
        %v523 = vsel %vm364, %v521, 0.0
        %526 = vrot.lane.b32.xlu0 %v510, 32
        %v527 = vpop.permute.xlu0 %526
        %528 = vrot.lane.b32.xlu0 %v511, 32
        %v529 = vpop.permute.xlu0 %528
        %534 = vrot.lane.b32.xlu0 %v522, 64
        %v535 = vpop.permute.xlu0 %534
        %536 = vrot.lane.b32.xlu0 %v523, 64
        %v537 = vpop.permute.xlu0 %536
        %v540 = vsel %vm383, %v516, %v527
        %v541 = vsel %vm383, %v517, %v529
        %v542 = vsel %vm386, %v540, %v535
        %v543 = vsel %vm386, %v541, %v537
        %v544 = vld [vmem:[%s4] sm:$0xff]
        %v545 = vld [vmem:[%s4 + $0x8] sm:$0xff]
        %v546 = vld [vmem:[%s4 + $0x10] sm:$0xff]
        %v547 = vld [vmem:[%s4 + $0x18] sm:$0xff]
        %v548 = vld [vmem:[%s4 + $0x20] sm:$0xff]
        %v549 = vld [vmem:[%s4 + $0x28] sm:$0xff]
        %v550 = vld [vmem:[%s4 + $0x30] sm:$0xff]
        %v551 = vld [vmem:[%s4 + $0x38] sm:$0xff]
        %v552 = vld [vmem:[%s4 + $0x40] sm:$0xff]
        %v553 = vld [vmem:[%s4 + $0x48] sm:$0xff]
        %v554 = vld [vmem:[%s4 + $0x50] sm:$0xff]
        %v555 = vld [vmem:[%s4 + $0x58] sm:$0xff]
        %v556 = vld [vmem:[%s5] sm:$0x1]
        %v558 = vlaneseq
        %v559 = vshrl.u32 %v558, 7
        %v560 = vsub.s32 0, %v559
        %v561 = vrot.slane %v556, %v560
        %v564 = vsel %vm408, %v542, 0
        %v567 = vsel %vm408, %v543, 0
        %569 = vmatprep.subr.mxu0 0.0
        %570 = vmatpush1.msra.mxu0 0.0
        %571 = vmatprep.subr.mxu0 0.0
        %572 = vmatpush1.msra.mxu0 0.0
        %573 = vmatprep.subr.mxu0 0.0
        %574 = vmatpush1.msra.mxu0 0.0
        %575 = vmatprep.subr.mxu0 0.0
        %576 = vmatpush1.msra.mxu0 0.0
        %577 = vmatprep.subr.mxu0 0.0
        %578 = vmatpush1.msra.mxu0 %v555
        %579 = vmatprep.subr.mxu0 0.0
        %580 = vmatpush1.msra.mxu0 %v554
        %581 = vmatprep.subr.mxu0 0.0
        %582 = vmatpush1.msra.mxu0 %v553
        %583 = vmatprep.subr.mxu0 0.0
        %584 = vmatpush1.msra.mxu0 %v552
        %585 = vmatprep.subr.mxu0 0.0
        %586 = vmatpush1.msra.mxu0 %v551
        %587 = vmatprep.subr.mxu0 0.0
        %588 = vmatpush1.msra.mxu0 %v550
        %589 = vmatprep.subr.mxu0 0.0
        %590 = vmatpush1.msra.mxu0 %v549
        %591 = vmatprep.subr.mxu0 0.0
        %592 = vmatpush1.msra.mxu0 %v548
        %593 = vmatprep.subr.mxu0 0.0
        %594 = vmatpush1.msra.mxu0 %v547
        %595 = vmatprep.subr.mxu0 0.0
        %596 = vmatpush1.msra.mxu0 %v546
        %597 = vmatprep.subr.mxu0 0.0
        %598 = vmatpush1.msra.mxu0 %v545
        %599 = vmatprep.subr.mxu0 0.0
        %600 = vmatpush1.msra.mxu0 %v544
        %601 = vmatprep.subr.mxu0 0.0
        %602 = vmatpush2.msra.mxu0 0.0
        %603 = vmatprep.subr.mxu0 0.0
        %604 = vmatpush2.msra.mxu0 0.0
        %605 = vmatprep.subr.mxu0 0.0
        %606 = vmatpush2.msra.mxu0 0.0
        %607 = vmatprep.subr.mxu0 0.0
        %608 = vmatpush2.msra.mxu0 0.0
        %609 = vmatprep.subr.mxu0 0.0
        %610 = vmatpush2.msra.mxu0 0.0
        %611 = vmatprep.subr.mxu0 0.0
        %612 = vmatpush2.msra.mxu0 0.0
        %613 = vmatprep.subr.mxu0 0.0
        %614 = vmatpush2.msra.mxu0 0.0
        %615 = vmatprep.subr.mxu0 0.0
        %616 = vmatpush2.msra.mxu0 0.0
        %617 = vmatprep.subr.mxu0 0.0
        %618 = vmatpush2.msra.mxu0 0.0
        %619 = vmatprep.subr.mxu0 0.0
        %620 = vmatpush2.msra.mxu0 0.0
        %621 = vmatprep.subr.mxu0 0.0
        %622 = vmatpush2.msra.mxu0 0.0
        %623 = vmatprep.subr.mxu0 0.0
        %624 = vmatpush2.msra.mxu0 0.0
        %625 = vmatprep.subr.mxu0 0.0
        %626 = vmatpush2.msra.mxu0 0.0
        %627 = vmatprep.subr.mxu0 0.0
        %628 = vmatpush2.msra.mxu0 0.0
        %629 = vmatprep.subr.mxu0 0.0
        %630 = vmatpush2.msra.mxu0 0.0
        %631 = vmatprep.subr.mxu0 0.0
        %632 = vmatpush2.msra.mxu0 0.0
        %633 = vmatprep.mubr.f32.mxu0 0.0
        %634 = vmatmul.mubr.f32.gmra.mxu0 %v564
        %v635 = vpop.f32.mrf.mxu0
        %v636 = vadd.f32 %v561, %v635
        %v637 = vpop.f32.mrf.mxu0
        %638 = vmatprep.mubr.f32.mxu0 0.0
        %639 = vmatmul.mubr.f32.gmra.mxu0 %v567
        %v640 = vpop.f32.mrf.mxu0
        %v641 = vadd.f32 %v561, %v640
        %v642 = vpop.f32.mrf.mxu0
        %643 = vdwg.mxu0
        %v644 = vmax.f32 %v636, 0.0
        %v645 = vmax.f32 %v641, 0.0
        %v646 = vand.u32 2147483647, %v636
        %v647 = vand.u32 2147483647, %v641
        %v648 = vsub.f32 0.0, %v646
        %v649 = vsub.f32 0.0, %v647
        %v650 = vmul.f32 %v648, 1.442695
        %v651 = vpow.pop %v650
        %v652 = vmul.f32 %v649, 1.442695
        %v653 = vpow.pop %v652
        %v654 = vadd.f32 %v651, 1.0
        %v655 = vadd.f32 %v653, 1.0
        %v656 = vlog2.pop %v654
        %v657 = vmul.f32 %v656, 0.6931472
        %v658 = vlog2.pop %v655
        %v659 = vmul.f32 %v658, 0.6931472
        %v660 = vadd.f32 %v644, %v657
        %v661 = vadd.f32 %v645, %v659
        %v662 = vtanh.pop %v660
        %v663 = vtanh.pop %v661
        %v664 = vmul.f32 %v636, %v662
        %v665 = vmul.f32 %v641, %v663
        %v666 = vld [vmem:[%s6] sm:$0xff]
        %v667 = vld [vmem:[%s6 + $0x8] sm:$0xff]
        %v668 = vld [vmem:[%s6 + $0x10] sm:$0xff]
        %v669 = vld [vmem:[%s6 + $0x18] sm:$0xff]
        %v670 = vld [vmem:[%s7] sm:$0x1]
        %v672 = vlaneseq
        %v673 = vshrl.u32 %v672, 7
        %v674 = vsub.s32 0, %v673
        %v675 = vrot.slane %v670, %v674
        %v678 = vsel %vm383, %v664, 0
        %v681 = vsel %vm383, %v665, 0
        %683 = vmatprep.subr.mxu0 0.0
        %684 = vmatpush1.msra.mxu0 0.0
        %685 = vmatprep.subr.mxu0 0.0
        %686 = vmatpush1.msra.mxu0 0.0
        %687 = vmatprep.subr.mxu0 0.0
        %688 = vmatpush1.msra.mxu0 0.0
        %689 = vmatprep.subr.mxu0 0.0
        %690 = vmatpush1.msra.mxu0 0.0
        %691 = vmatprep.subr.mxu0 0.0
        %692 = vmatpush1.msra.mxu0 0.0
        %693 = vmatprep.subr.mxu0 0.0
        %694 = vmatpush1.msra.mxu0 0.0
        %695 = vmatprep.subr.mxu0 0.0
        %696 = vmatpush1.msra.mxu0 0.0
        %697 = vmatprep.subr.mxu0 0.0
        %698 = vmatpush1.msra.mxu0 0.0
        %699 = vmatprep.subr.mxu0 0.0
        %700 = vmatpush1.msra.mxu0 0.0
        %701 = vmatprep.subr.mxu0 0.0
        %702 = vmatpush1.msra.mxu0 0.0
        %703 = vmatprep.subr.mxu0 0.0
        %704 = vmatpush1.msra.mxu0 0.0
        %705 = vmatprep.subr.mxu0 0.0
        %706 = vmatpush1.msra.mxu0 0.0
        %707 = vmatprep.subr.mxu0 0.0
        %708 = vmatpush1.msra.mxu0 %v669
        %709 = vmatprep.subr.mxu0 0.0
        %710 = vmatpush1.msra.mxu0 %v668
        %711 = vmatprep.subr.mxu0 0.0
        %712 = vmatpush1.msra.mxu0 %v667
        %713 = vmatprep.subr.mxu0 0.0
        %714 = vmatpush1.msra.mxu0 %v666
        %715 = vmatprep.subr.mxu0 0.0
        %716 = vmatpush2.msra.mxu0 0.0
        %717 = vmatprep.subr.mxu0 0.0
        %718 = vmatpush2.msra.mxu0 0.0
        %719 = vmatprep.subr.mxu0 0.0
        %720 = vmatpush2.msra.mxu0 0.0
        %721 = vmatprep.subr.mxu0 0.0
        %722 = vmatpush2.msra.mxu0 0.0
        %723 = vmatprep.subr.mxu0 0.0
        %724 = vmatpush2.msra.mxu0 0.0
        %725 = vmatprep.subr.mxu0 0.0
        %726 = vmatpush2.msra.mxu0 0.0
        %727 = vmatprep.subr.mxu0 0.0
        %728 = vmatpush2.msra.mxu0 0.0
        %729 = vmatprep.subr.mxu0 0.0
        %730 = vmatpush2.msra.mxu0 0.0
        %731 = vmatprep.subr.mxu0 0.0
        %732 = vmatpush2.msra.mxu0 0.0
        %733 = vmatprep.subr.mxu0 0.0
        %734 = vmatpush2.msra.mxu0 0.0
        %735 = vmatprep.subr.mxu0 0.0
        %736 = vmatpush2.msra.mxu0 0.0
        %737 = vmatprep.subr.mxu0 0.0
        %738 = vmatpush2.msra.mxu0 0.0
        %739 = vmatprep.subr.mxu0 0.0
        %740 = vmatpush2.msra.mxu0 0.0
        %741 = vmatprep.subr.mxu0 0.0
        %742 = vmatpush2.msra.mxu0 0.0
        %743 = vmatprep.subr.mxu0 0.0
        %744 = vmatpush2.msra.mxu0 0.0
        %745 = vmatprep.subr.mxu0 0.0
        %746 = vmatpush2.msra.mxu0 0.0
        %747 = vmatprep.mubr.f32.mxu0 0.0
        %748 = vmatmul.mubr.f32.gmra.mxu0 %v678
        %v749 = vpop.f32.mrf.mxu0
        %v750 = vadd.f32 %v675, %v749
        %v751 = vpop.f32.mrf.mxu0
        %752 = vmatprep.mubr.f32.mxu0 0.0
        %753 = vmatmul.mubr.f32.gmra.mxu0 %v681
        %v754 = vpop.f32.mrf.mxu0
        %v755 = vadd.f32 %v675, %v754
        %v756 = vpop.f32.mrf.mxu0
        %757 = vdwg.mxu0
        %v758 = vld [vmem:[%s323] sm:$0xff]
        %v759 = vld [vmem:[%s323 + $0x8] sm:$0xff]
        %vm760 = vcmp.gt.f32.partialorder %v758, 0.5
        %vm761 = vcmp.gt.f32.partialorder %v759, 0.5
        %v762 = vsel %vm760, 1, 0
        %v763 = vsel %vm761, 1, 0
        %764 = vset.pattern.permute.xlu0 0
        %765 = vperm.xlu0 %764, %v762
        %v766 = vpop.permute.xlu0 %765
        %767 = vset.pattern.permute.xlu0 0
        %768 = vperm.xlu0 %767, %v763
        %v769 = vpop.permute.xlu0 %768
        %vm770 = vcmp.eq.s32.totalorder %v766, 1
        %vm771 = vcmp.eq.s32.totalorder %v769, 1
        %v772 = vsel %vm770, 0.0, %v750
        %v773 = vsel %vm771, 0.0, %v755
        %v774 = vadd.f32 %v324, %v772
        %v775 = vadd.f32 %v325, %v773
        %776 = vst.msk [vmem:[%s313] sm:$0xff] %vm383, %v774
        %777 = vst.msk [vmem:[%s313 + $0x8] sm:$0xff] %vm383, %v775
        %s778 = sand.u32 %s208, 1
        %s779 = scalar_lea.sflag [#allocation3], %s778
        %s780 = sand.u32 %s208, 1
        %s781 = smul.addr %s780, 16
        %s782 = scalar_lea.vmem [#allocation2], %s781
        // Predicated region
        $region53: #{tpu_custom_call.1} parent=51 // pred_check
          %p783 = pneg %p218
        $region54: #{tpu_custom_call.1} parent=51 // pred_check_branch
          %785 = sbr.rel (%p783) target = $region56
        $region55: #{tpu_custom_call.1} parent=51 // pred_region
          %s787 = ssub.s32 256, 256
          %788 = vsyncadd %s779, %s787
          %s789 = smul.addr %s22, 2
          %s790 = smul.addr %s789, 128
          %s791 = scalar_lea.hbm %s8, %s790
          %s792 = sshll.u32 %s782, 4
          %s793 = int_to_ptr.vmem [resolvable:$true] %s792
          %798 = dma.vmem_to_hbm [thread:$0]  %s793, 256, %s791, %s779, 128, 128, 8
        $region56: #{tpu_custom_call.1} parent=51 // pred_fallthru
          _
      $region52: #{tpu_custom_call.1} parent=5 // pred_fallthru
        _
      %p799 = scmp.le.s32.totalorder 2, %s17
      // Predicated region
      $region57: #{tpu_custom_call.1} parent=5 // pred_check
        %p800 = pneg %p799
      $region58: #{tpu_custom_call.1} parent=5 // pred_check_branch
        %802 = sbr.rel (%p800) target = $region60
      $region59: #{tpu_custom_call.1} parent=5 // pred_region
        %s803 = ssub.s32 %s17, 2
        // Predicated region
        $region61: #{tpu_custom_call.1} parent=59 // pred_check
          %p804 = pneg %p224
        $region62: #{tpu_custom_call.1} parent=59 // pred_check_branch
          %806 = sbr.rel (%p804) target = $region64
        $region63: #{tpu_custom_call.1} parent=59 // pred_region
          %s807 = sand.u32 %s209, 1
          %s808 = scalar_lea.sflag [#allocation3], %s807
          %s809 = sand.u32 %s209, 1
          %s810 = smul.addr %s809, 16
          %s811 = scalar_lea.vmem [#allocation2], %s810
          %812 = dma.done %s808, 256
        $region64: #{tpu_custom_call.1} parent=59 // pred_fallthru
          _
      $region60: #{tpu_custom_call.1} parent=5 // pred_fallthru
        _
    $region6: #{tpu_custom_call.1} parent=1 // loop_footer
      %s21 = sadd.s32 1, %s17
    $region7: #{tpu_custom_call.1} parent=1 // loop_footer_branch
      %16 = sbr.rel target = $region3
    $region8: #{tpu_custom_call.1} parent=1 // loop_exit
      _
    %813 = vsyncpa [#allocation3], 1
    %s814 = scalar_lea.sflag [#allocation3], 1
    %815 = vsyncpa %s814, 1

</llo_original>
